<compile_context>
chip_gen: v7x
topology: tpu7x:2x2x1
jax: 0.10.0
libtpu: 0.0.40
codegen_flags: <defaults>
</compile_context>

<pallas_src>
import jax
import jax.numpy as jnp
from jax.experimental import pallas as pl
from jax.experimental.pallas import tpu as pltpu

_PACK = 8                               # tokens packed per lane-dense row (f32 sublanes)
_TILE_VMEM_BUDGET = 10 * 1024 * 1024    # double-buffered (x tile + out tile) budget


def _round_up(a, b):
    return ((a + b - 1) // b) * b


def _router_kernel(x_ref, w_ref, b_ref, out_ref):
    # One fused (tm, K) @ (K, N) matmul on the MXU (f32 accumulate) + bias add.
    y = jnp.dot(x_ref[...], w_ref[...], preferred_element_type=jnp.float32)
    out_ref[...] = (y + b_ref[...]).astype(out_ref.dtype)


def _pallas_linear(x2, w, b, *, tile_budget_bytes=_TILE_VMEM_BUDGET):
    """x2: (M, K), w: (K, N), b: (1, N)  ->  x2 @ w + b  of shape (M, N)."""
    M, K = x2.shape
    N = w.shape[1]
    itemsize = x2.dtype.itemsize

    # Per-row VMEM cost of (x tile + out tile), with 128-lane padding of
    # narrow last dims accounted for (matters on the unpacked fallback path).
    row_bytes = (_round_up(K, 128) + _round_up(N, 128)) * itemsize
    tm = max(8, (tile_budget_bytes // (2 * row_bytes)) // 8 * 8)
    tm = min(tm, _round_up(M, 8))

    n_steps = pl.cdiv(M, tm)
    if n_steps > 1:
        # Even step count so v7x's two TensorCores both get balanced work.
        n_steps = _round_up(n_steps, 2)
        tm = _round_up(pl.cdiv(M, n_steps), 8)
        n_steps = pl.cdiv(M, tm)

    return pl.pallas_call(
        _router_kernel,
        out_shape=jax.ShapeDtypeStruct((M, N), x2.dtype),
        grid_spec=pltpu.PrefetchScalarGridSpec(
            num_scalar_prefetch=0,
            grid=(n_steps,),
            in_specs=[
                pl.BlockSpec((tm, K), lambda i: (i, 0)),   # streamed X tile
                pl.BlockSpec((K, N), lambda i: (0, 0)),    # resident fused weights
                pl.BlockSpec((1, N), lambda i: (0, 0)),    # resident fused bias
            ],
            out_specs=pl.BlockSpec((tm, N), lambda i: (i, 0)),
        ),
        compiler_params=pltpu.CompilerParams(
            dimension_semantics=("parallel",)),
    )(x2, w, b)


def experts_router(x, w_soft, b_soft, w_noise, b_noise, *,
                   tile_budget_bytes=_TILE_VMEM_BUDGET):
    """x: (..., D).  w_*: (E, D) (PyTorch nn.Linear layout).  b_*: (E,).
    Returns (soft_logits, noise_logits), each shaped (..., E)."""
    orig_shape = x.shape
    D = orig_shape[-1]
    E = w_soft.shape[0]
    x2 = x.reshape(-1, D)
    M = x2.shape[0]

    # Fuse the two heads into one matmul: (D, 2E) weight, (1, 2E) bias.
    w_cat = jnp.concatenate([w_soft.T, w_noise.T], axis=1)          # (D, 2E)
    b_cat = jnp.concatenate([b_soft, b_noise]).reshape(1, 2 * E)    # (1, 2E)

    if M >= _PACK and M % _PACK == 0:
        # Lane-dense path: 8 tokens per packed row (free, row-major reshape),
        # block-diagonal weight so output lanes = 8*2E (=128 at E=8).
        xp = x2.reshape(M // _PACK, _PACK * D)                       # free
        w_bd = jnp.kron(jnp.eye(_PACK, dtype=w_cat.dtype), w_cat)    # (8D, 8*2E)
        b_bd = jnp.tile(b_cat, (1, _PACK))                           # (1, 8*2E)
        out = _pallas_linear(xp, w_bd, b_bd,
                             tile_budget_bytes=tile_budget_bytes)
        out = out.reshape(M, 2 * E)                                  # free
    else:
        # Ragged M: unpacked fallback — narrower lanes, but zero extra HBM
        # passes over X (no pad, no slice).
        out = _pallas_linear(x2, w_cat, b_cat,
                             tile_budget_bytes=tile_budget_bytes)

    out_shape = orig_shape[:-1] + (E,)
    soft = out[:, :E].reshape(out_shape)
    noise = out[:, E:].reshape(out_shape)
    return soft, noise


if __name__ == "__main__":
    # Small shapes consistent with the module: batch=2, seq=8, embed_dim=32,
    # n_experts=8.
    batch, seq, embed_dim, n_experts = 2, 8, 32, 8

    key = jax.random.PRNGKey(0)
    kx, kws, kbs, kwn, kbn = jax.random.split(key, 5)

    x = jax.random.normal(kx, (batch, seq, embed_dim), dtype=jnp.float32)
    # Deterministic synthetic parameters (PyTorch nn.Linear layout: (E, D)).
    w_soft = jax.random.normal(kws, (n_experts, embed_dim), jnp.float32) * 0.1
    b_soft = jax.random.normal(kbs, (n_experts,), jnp.float32) * 0.1
    w_noise = jax.random.normal(kwn, (n_experts, embed_dim), jnp.float32) * 0.1
    b_noise = jax.random.normal(kbn, (n_experts,), jnp.float32) * 0.1

    soft, noise = experts_router(x, w_soft, b_soft, w_noise, b_noise)
    jax.block_until_ready((soft, noise))

    soft_ref = x @ w_soft.T + b_soft
    noise_ref = x @ w_noise.T + b_noise
    assert soft.shape == (batch, seq, n_experts)
    assert noise.shape == (batch, seq, n_experts)
    assert jnp.allclose(soft, soft_ref, atol=2e-3, rtol=2e-3)
    assert jnp.allclose(noise, noise_ref, atol=2e-3, rtol=2e-3)

    # Ragged M (M % 8 != 0): exercises the unpacked fallback + masked final
    # grid block (no wrapper pad/slice).
    x_rag = jax.random.normal(kx, (3, 401, embed_dim), dtype=jnp.float32)
    soft_r, noise_r = experts_router(x_rag, w_soft, b_soft, w_noise, b_noise)
    jax.block_until_ready((soft_r, noise_r))
    assert jnp.allclose(soft_r, x_rag @ w_soft.T + b_soft, atol=2e-3, rtol=2e-3)
    assert jnp.allclose(noise_r, x_rag @ w_noise.T + b_noise, atol=2e-3, rtol=2e-3)

    # Packed path with a tiny tile budget: multi-step (even) parallel grid and
    # a ragged final grid block, verifying OOB read/write masking end-to-end.
    x_med = jax.random.normal(kx, (2, 520, embed_dim), dtype=jnp.float32)
    soft_m, noise_m = experts_router(x_med, w_soft, b_soft, w_noise, b_noise,
                                     tile_budget_bytes=96 * 1024)
    jax.block_until_ready((soft_m, noise_m))
    assert jnp.allclose(soft_m, x_med @ w_soft.T + b_soft, atol=2e-3, rtol=2e-3)
    assert jnp.allclose(noise_m, x_med @ w_noise.T + b_noise, atol=2e-3, rtol=2e-3)

    print("KERNEL_OK")
</pallas_src>

<mosaic_0001>
module attributes {stable_mosaic.version = 11 : i64} {
  func.func @_router_kernel(%arg0: i32, %arg1: memref<8x256xf32, #tpu.memory_space<vmem>>, %arg2: memref<256x128xf32, #tpu.memory_space<vmem>>, %arg3: memref<1x128xf32, #tpu.memory_space<vmem>>, %arg4: memref<8x128xf32, #tpu.memory_space<vmem>>) attributes {dimension_semantics = [#tpu.dimension_semantics<parallel>], iteration_bounds = array<i64: 1>, scalar_prefetch = 0 : i64, scratch_operands = 0 : i64, tpu.core_type = #tpu.core_type<tc>, window_params = [{transform_indices = @transform_0, window_bounds = array<i64: 8, 256>}, {pipeline_mode = #tpu.pipeline_mode<synchronous>, transform_indices = @transform_1, window_bounds = array<i64: 256, 128>}, {pipeline_mode = #tpu.pipeline_mode<synchronous>, transform_indices = @transform_2, window_bounds = array<i64: 1, 128>}, {transform_indices = @transform_3, window_bounds = array<i64: 8, 128>}]} {
    %c0 = arith.constant 0 : index
    %c0_0 = arith.constant 0 : index
    %0 = vector.load %arg1[%c0, %c0_0] : memref<8x256xf32, #tpu.memory_space<vmem>>, vector<8x256xf32>
    %c0_1 = arith.constant 0 : index
    %c0_2 = arith.constant 0 : index
    %1 = vector.load %arg2[%c0_1, %c0_2] : memref<256x128xf32, #tpu.memory_space<vmem>>, vector<256x128xf32>
    %cst = arith.constant dense<0.000000e+00> : vector<8x128xf32>
    %2 = tpu.matmul %0, %1, %cst {dimension_numbers = #tpu.dot_dimension_numbers<[1], [0], [0], [1], [0, 0, 1, 1], [], []>} : vector<8x256xf32>, vector<256x128xf32>, vector<8x128xf32> -> vector<8x128xf32>
    %c0_3 = arith.constant 0 : index
    %c0_4 = arith.constant 0 : index
    %3 = vector.load %arg3[%c0_3, %c0_4] : memref<1x128xf32, #tpu.memory_space<vmem>>, vector<1x128xf32>
    %4 = vector.broadcast %3 : vector<1x128xf32> to vector<8x128xf32>
    %5 = arith.addf %2, %4 : vector<8x128xf32>
    %c0_5 = arith.constant 0 : index
    %c0_6 = arith.constant 0 : index
    %6 = vector.load %arg4[%c0_5, %c0_6] : memref<8x128xf32, #tpu.memory_space<vmem>>, vector<8x128xf32>
    tpu.vector_store %arg4[%c0_5, %c0_6], %5 {strides = array<i32>} : memref<8x128xf32, #tpu.memory_space<vmem>>, vector<8x128xf32>,
    return
  }
  func.func @transform_0(%arg0: i32) -> (i32, i32) {
    %c0_i32 = arith.constant 0 : i32
    %c0_i32_0 = arith.constant 0 : i32
    return %arg0, %c0_i32 : i32, i32
  }
  func.func @transform_1(%arg0: i32) -> (i32, i32) {
    %c0_i32 = arith.constant 0 : i32
    %c0_i32_0 = arith.constant 0 : i32
    %c0_i32_1 = arith.constant 0 : i32
    return %c0_i32, %c0_i32_0 : i32, i32
  }
  func.func @transform_2(%arg0: i32) -> (i32, i32) {
    %c0_i32 = arith.constant 0 : i32
    %c0_i32_0 = arith.constant 0 : i32
    %c0_i32_1 = arith.constant 0 : i32
    return %c0_i32, %c0_i32_0 : i32, i32
  }
  func.func @transform_3(%arg0: i32) -> (i32, i32) {
    %c0_i32 = arith.constant 0 : i32
    %c0_i32_0 = arith.constant 0 : i32
    return %arg0, %c0_i32 : i32, i32
  }
}

</mosaic_0001>

<llo_original>
// kernel: tpu_custom_call.1
$region0: #{tpu_custom_call.1}
  #allocation0 [shape = 'u32[]', space=smem, size = 0x4, offset = 0x4, fixed_abs, tag = 'smem constant byte address 0x4 - core index']
  #allocation1 [shape = 'u32[144,128]{1,0:T(1,128)}', space=vmem, size = 0x12000, scoped, tag = 'internal scratch']
  %s0 = inlined_call_operand.hbm [shape: f32[2,256], index: 0, kind: input, shape index: {}]
  %s1 = inlined_call_operand.hbm [shape: f32[256,128], index: 1, kind: input, shape index: {}]
  %s2 = inlined_call_operand.vmem [shape: f32[1,128], index: 2, kind: input, shape index: {}]
  %s3 = inlined_call_operand.hbm [shape: f32[2,128], index: 3, kind: output, shape index: {}]
  %s4 = sld [smem:[#allocation0]]
  $region30: #{tpu_custom_call.1} parent=0
    _
  %s6 = ssub.s32 1, %s4
  %s7 = scalar_select 0, %s6, %s4
  $region1: #{tpu_custom_call.1} parent=0
    #allocation2 [shape = 'u8[8192]{0}', space=vmem, size = 0x2000, scoped, tag = 'input window, operand 0, single buffered']
    #allocation3 [shape = 's32[1]{0}', space=sflag, size = 0x4, scoped, tag = 'scoped memory for tpu_custom_call.1']
    #allocation4 [shape = 's32[1]{0}', space=sflag, size = 0x4, scoped, tag = 'scoped memory for tpu_custom_call.1']
    #allocation5 [shape = 'u8[131072]{0}', space=vmem, size = 0x20000, scoped, tag = 'input window, operand 1, single buffered']
    #allocation6 [shape = 's32[1]{0}', space=sflag, size = 0x4, scoped, tag = 'scoped memory for tpu_custom_call.1']
    #allocation7 [shape = 'u8[4096]{0}', space=vmem, size = 0x1000, scoped, tag = 'output window, operand 0, single buffered']
    %8 = vsyncpa [#allocation3], 0
    %9 = vsyncpa [#allocation6], 0
    %10 = vsyncpa [#allocation4], 0
    // Predicated region
    $region2: #{tpu_custom_call.1} parent=1 // pred_check
      _
    $region3: #{tpu_custom_call.1} parent=1 // pred_check_branch
      %12 = sbr.rel (0) target = $region5
    $region4: #{tpu_custom_call.1} parent=1 // pred_region
      %s14 = ssub.s32 256, 64
      %15 = vsyncadd [#allocation3], %s14
      %s16 = sshll.u32 [#allocation2], 4
      %s17 = int_to_ptr.vmem [resolvable:$true] %s16
      %22 = dma.hbm_to_vmem [thread:$0]  %s0, 64, %s17, [#allocation3], 64, 64, 4
    $region5: #{tpu_custom_call.1} parent=1 // pred_fallthru
      _
    // Predicated region
    $region6: #{tpu_custom_call.1} parent=1 // pred_check
      _
    $region7: #{tpu_custom_call.1} parent=1 // pred_check_branch
      %24 = sbr.rel (0) target = $region9
    $region8: #{tpu_custom_call.1} parent=1 // pred_region
      %s26 = ssub.s32 4096, 4096
      %27 = vsyncadd [#allocation6], %s26
      %s28 = sshll.u32 [#allocation5], 4
      %s29 = int_to_ptr.vmem [resolvable:$true] %s28
      %34 = dma.hbm_to_vmem [thread:$0]  %s1, 4096, %s29, [#allocation6], 128, 128, 8
    $region9: #{tpu_custom_call.1} parent=1 // pred_fallthru
      _
    // Predicated region
    $region10: #{tpu_custom_call.1} parent=1 // pred_check
      _
    $region11: #{tpu_custom_call.1} parent=1 // pred_check_branch
      %36 = sbr.rel (0) target = $region13
    $region12: #{tpu_custom_call.1} parent=1 // pred_region
      _
    $region13: #{tpu_custom_call.1} parent=1 // pred_fallthru
      _
    // Predicated region
    $region14: #{tpu_custom_call.1} parent=1 // pred_check
      _
    $region15: #{tpu_custom_call.1} parent=1 // pred_check_branch
      %38 = sbr.rel (0) target = $region17
    $region16: #{tpu_custom_call.1} parent=1 // pred_region
      %39 = dma.done [#allocation3], 256
    $region17: #{tpu_custom_call.1} parent=1 // pred_fallthru
      _
    // Predicated region
    $region18: #{tpu_custom_call.1} parent=1 // pred_check
      _
    $region19: #{tpu_custom_call.1} parent=1 // pred_check_branch
      %41 = sbr.rel (0) target = $region21
    $region20: #{tpu_custom_call.1} parent=1 // pred_region
      %42 = dma.done [#allocation6], 4096
    $region21: #{tpu_custom_call.1} parent=1 // pred_fallthru
      _
    %v43 = vld [vmem:[#allocation2] sm:$0xf]
    %v44 = vld [vmem:[#allocation2 + $0x4] sm:$0xf]
    %v45 = vld [vmem:[#allocation2 + $0x8] sm:$0xf]
    %v46 = vld [vmem:[#allocation2 + $0xc] sm:$0xf]
    %v47 = vld [vmem:[#allocation5] sm:$0xff]
    %v48 = vld [vmem:[#allocation5 + $0x8] sm:$0xff]
    %v49 = vld [vmem:[#allocation5 + $0x10] sm:$0xff]
    %v50 = vld [vmem:[#allocation5 + $0x18] sm:$0xff]
    %v51 = vld [vmem:[#allocation5 + $0x20] sm:$0xff]
    %v52 = vld [vmem:[#allocation5 + $0x28] sm:$0xff]
    %v53 = vld [vmem:[#allocation5 + $0x30] sm:$0xff]
    %v54 = vld [vmem:[#allocation5 + $0x38] sm:$0xff]
    %v55 = vld [vmem:[#allocation5 + $0x40] sm:$0xff]
    %v56 = vld [vmem:[#allocation5 + $0x48] sm:$0xff]
    %v57 = vld [vmem:[#allocation5 + $0x50] sm:$0xff]
    %v58 = vld [vmem:[#allocation5 + $0x58] sm:$0xff]
    %v59 = vld [vmem:[#allocation5 + $0x60] sm:$0xff]
    %v60 = vld [vmem:[#allocation5 + $0x68] sm:$0xff]
    %v61 = vld [vmem:[#allocation5 + $0x70] sm:$0xff]
    %v62 = vld [vmem:[#allocation5 + $0x78] sm:$0xff]
    %v63 = vld [vmem:[#allocation5 + $0x80] sm:$0xff]
    %v64 = vld [vmem:[#allocation5 + $0x88] sm:$0xff]
    %v65 = vld [vmem:[#allocation5 + $0x90] sm:$0xff]
    %v66 = vld [vmem:[#allocation5 + $0x98] sm:$0xff]
    %v67 = vld [vmem:[#allocation5 + $0xa0] sm:$0xff]
    %v68 = vld [vmem:[#allocation5 + $0xa8] sm:$0xff]
    %v69 = vld [vmem:[#allocation5 + $0xb0] sm:$0xff]
    %v70 = vld [vmem:[#allocation5 + $0xb8] sm:$0xff]
    %v71 = vld [vmem:[#allocation5 + $0xc0] sm:$0xff]
    %v72 = vld [vmem:[#allocation5 + $0xc8] sm:$0xff]
    %v73 = vld [vmem:[#allocation5 + $0xd0] sm:$0xff]
    %v74 = vld [vmem:[#allocation5 + $0xd8] sm:$0xff]
    %v75 = vld [vmem:[#allocation5 + $0xe0] sm:$0xff]
    %v76 = vld [vmem:[#allocation5 + $0xe8] sm:$0xff]
    %v77 = vld [vmem:[#allocation5 + $0xf0] sm:$0xff]
    %v78 = vld [vmem:[#allocation5 + $0xf8] sm:$0xff]
    %v79 = vld [vmem:[%s2] sm:$0x1]
    %v81 = vlaneseq
    %v82 = vshrl.u32 %v81, 7
    %v83 = vsub.s32 0, %v82
    %v84 = vrot.slane %v79, %v83
    %v90 = vcombine.low %v43, %v44
    %v91 = vcombine.low %v45, %v46
    %v93 = vunpack.c.l.s4 1983009808
    %v94 = vunpack.c.0.s8 %v93
    %v95 = vlaneseq
    %v96 = vshrl.u32 %v95, 7
    %v97 = vsub.s32 %v94, %v96
    %v98 = vrot.slane %v90, %v97
    %v100 = vunpack.c.l.s4 1983009808
    %v101 = vunpack.c.0.s8 %v100
    %v102 = vlaneseq
    %v103 = vshrl.u32 %v102, 7
    %v104 = vsub.s32 %v101, %v103
    %v105 = vrot.slane %v91, %v104
    %v106 = vcombine.low %v98, %v105
    %v107 = vcombine.high %v98, %v105
    %110 = vmatprep.subr.mxu0 0.0
    %111 = vmatpush1.msra.mxu0 %v47
    %112 = vmatprep.subr.mxu0 0.0
    %113 = vmatpush1.msra.mxu0 %v48
    %114 = vmatprep.subr.mxu0 0.0
    %115 = vmatpush1.msra.mxu0 %v49
    %116 = vmatprep.subr.mxu0 0.0
    %117 = vmatpush1.msra.mxu0 %v50
    %118 = vmatprep.subr.mxu0 0.0
    %119 = vmatpush1.msra.mxu0 %v51
    %120 = vmatprep.subr.mxu0 0.0
    %121 = vmatpush1.msra.mxu0 %v52
    %122 = vmatprep.subr.mxu0 0.0
    %123 = vmatpush1.msra.mxu0 %v53
    %124 = vmatprep.subr.mxu0 0.0
    %125 = vmatpush1.msra.mxu0 %v54
    %126 = vmatprep.subr.mxu0 0.0
    %127 = vmatpush1.msra.mxu0 %v55
    %128 = vmatprep.subr.mxu0 0.0
    %129 = vmatpush1.msra.mxu0 %v56
    %130 = vmatprep.subr.mxu0 0.0
    %131 = vmatpush1.msra.mxu0 %v57
    %132 = vmatprep.subr.mxu0 0.0
    %133 = vmatpush1.msra.mxu0 %v58
    %134 = vmatprep.subr.mxu0 0.0
    %135 = vmatpush1.msra.mxu0 %v59
    %136 = vmatprep.subr.mxu0 0.0
    %137 = vmatpush1.msra.mxu0 %v60
    %138 = vmatprep.subr.mxu0 0.0
    %139 = vmatpush1.msra.mxu0 %v61
    %140 = vmatprep.subr.mxu0 0.0
    %141 = vmatpush1.msra.mxu0 %v62
    %142 = vmatprep.subr.mxu0 0.0
    %143 = vmatpush1.msra.mxu0 %v63
    %144 = vmatprep.subr.mxu0 0.0
    %145 = vmatpush1.msra.mxu0 %v64
    %146 = vmatprep.subr.mxu0 0.0
    %147 = vmatpush1.msra.mxu0 %v65
    %148 = vmatprep.subr.mxu0 0.0
    %149 = vmatpush1.msra.mxu0 %v66
    %150 = vmatprep.subr.mxu0 0.0
    %151 = vmatpush1.msra.mxu0 %v67
    %152 = vmatprep.subr.mxu0 0.0
    %153 = vmatpush1.msra.mxu0 %v68
    %154 = vmatprep.subr.mxu0 0.0
    %155 = vmatpush1.msra.mxu0 %v69
    %156 = vmatprep.subr.mxu0 0.0
    %157 = vmatpush1.msra.mxu0 %v70
    %158 = vmatprep.subr.mxu0 0.0
    %159 = vmatpush1.msra.mxu0 %v71
    %160 = vmatprep.subr.mxu0 0.0
    %161 = vmatpush1.msra.mxu0 %v72
    %162 = vmatprep.subr.mxu0 0.0
    %163 = vmatpush1.msra.mxu0 %v73
    %164 = vmatprep.subr.mxu0 0.0
    %165 = vmatpush1.msra.mxu0 %v74
    %166 = vmatprep.subr.mxu0 0.0
    %167 = vmatpush1.msra.mxu0 %v75
    %168 = vmatprep.subr.mxu0 0.0
    %169 = vmatpush1.msra.mxu0 %v76
    %170 = vmatprep.subr.mxu0 0.0
    %171 = vmatpush1.msra.mxu0 %v77
    %172 = vmatprep.subr.mxu0 0.0
    %173 = vmatpush1.msra.mxu0 %v78
    %174 = vmatprep.mubr.f32.mxu0 %v107
    %175 = vmatmul.mubr.f32.gmra.mrb[0].mxu0 %v106
    %v176 = vpop.f32.mrb[0].mxu0
    %v177 = vadd.f32 %v84, %v176
    %v178 = vpop.f32.mrb[0].mxu0
    %179 = vdwg.mxu0
    %180 = vst [vmem:[#allocation7] sm:$0xff] %v177
    // Predicated region
    $region22: #{tpu_custom_call.1} parent=1 // pred_check
      _
    $region23: #{tpu_custom_call.1} parent=1 // pred_check_branch
      %182 = sbr.rel (0) target = $region25
    $region24: #{tpu_custom_call.1} parent=1 // pred_region
      %s184 = ssub.s32 128, 32
      %185 = vsyncadd [#allocation4], %s184
      %s186 = sshll.u32 [#allocation7], 4
      %s187 = int_to_ptr.vmem [resolvable:$true] %s186
      %192 = dma.vmem_to_hbm [thread:$0]  %s187, 32, %s3, [#allocation4], 32, 32, 2
    $region25: #{tpu_custom_call.1} parent=1 // pred_fallthru
      _
    // Predicated region
    $region26: #{tpu_custom_call.1} parent=1 // pred_check
      _
    $region27: #{tpu_custom_call.1} parent=1 // pred_check_branch
      %194 = sbr.rel (0) target = $region29
    $region28: #{tpu_custom_call.1} parent=1 // pred_region
      %195 = dma.done [#allocation4], 128
    $region29: #{tpu_custom_call.1} parent=1 // pred_fallthru
      _
    %196 = vsyncpa [#allocation3], 1
    %197 = vsyncpa [#allocation6], 1
    %198 = vsyncpa [#allocation4], 1

</llo_original>
